<compile_context>
chip_gen: v7x
topology: tpu7x:2x2x1
jax: 0.10.0
libtpu: 0.0.40
codegen_flags: <defaults>
</compile_context>

<pallas_src>
import jax
import jax.numpy as jnp
from jax import lax
from jax.experimental import pallas as pl
from jax.experimental.pallas import tpu as pltpu


def _round_up(v, m):
    return ((v + m - 1) // m) * m


# -----------------------------------------------------------------------------
# Fused kernel: for grid point (l, e)
#   - e == 0: reset the aggregation accumulator (and seed h from x at l == 0)
#   - every step: gather/scatter-add the current edge tile into the accumulator
#   - e == last: run the BN-folded GIN MLP, emit layer-l output, update resident h
# -----------------------------------------------------------------------------
def _gin_fused_kernel(src_ref, dst_ref,          # scalar-prefetch: (E_pad,) int32, SMEM
                      scales_ref,                # (L,) f32 in SMEM: 1 + eps_l
                      x_ref,                     # (N_pad, Dp) f32, layer-0 node feats
                      ea_ref,                    # (TE, Dp) f32, edge-feature tile
                      w1_ref, b1_ref,            # (Dp, Hp) bf16, (1, Hp) f32  (BN1 folded)
                      w2_ref, b2_ref,            # (Hp, Dp) bf16, (1, Dp) f32  (BN2 folded)
                      out_ref,                   # (N_pad, Dp) f32, layer-l output block
                      h_scr, acc_scr):           # VMEM scratch, (N_pad, Dp) f32 each
    l = pl.program_id(0)
    e = pl.program_id(1)
    num_l = pl.num_programs(0)
    num_e = pl.num_programs(1)
    TE = ea_ref.shape[0]

    # Seed the VMEM-resident node features once (layer 0, first edge tile).
    @pl.when(jnp.logical_and(l == 0, e == 0))
    def _():
        h_scr[...] = x_ref[...]

    # New layer: reset the aggregation accumulator.
    @pl.when(e == 0)
    def _():
        acc_scr[...] = jnp.zeros_like(acc_scr)

    # --- message passing over this edge tile ---------------------------------
    # gather h[src[e]] via dynamic row reads (no (E,N) one-hot matmul) and
    # scatter-add relu(h_j + edge_attr) into the accumulator row dst[e].
    # Padded edges were given dst == N (a dummy row >= N) so they are harmless.
    base = e * TE

    def edge_body(i, carry):
        s = src_ref[base + i]
        d = dst_ref[base + i]
        msg = jnp.maximum(h_scr[pl.ds(s, 1), :] + ea_ref[pl.ds(i, 1), :], 0.0)
        acc_scr[pl.ds(d, 1), :] = acc_scr[pl.ds(d, 1), :] + msg
        return carry

    lax.fori_loop(0, TE, edge_body, 0)

    # --- last edge tile: BN-folded GIN MLP, emit this layer's output ---------
    @pl.when(e == num_e - 1)
    def _():
        scale = scales_ref[l]                                   # 1 + eps_l
        t = scale * h_scr[...] + acc_scr[...]                   # (N_pad, Dp) f32
        # Linear1 + folded BN1 + ReLU   (bf16 MXU operands, f32 accumulation)
        z = jnp.dot(t.astype(jnp.bfloat16), w1_ref[...],
                    preferred_element_type=jnp.float32) + b1_ref[...]
        z = jnp.maximum(z, 0.0)
        # Linear2 + folded per-layer BN2
        y = jnp.dot(z.astype(jnp.bfloat16), w2_ref[...],
                    preferred_element_type=jnp.float32) + b2_ref[...]

        @pl.when(l == num_l - 1)
        def _():
            out_ref[...] = y                                    # no ReLU on last layer

        @pl.when(l < num_l - 1)
        def _():
            yr = jnp.maximum(y, 0.0)                            # ReLU (dropout = id, eval)
            out_ref[...] = yr
            h_scr[...] = yr                                     # feeds the next layer


# -----------------------------------------------------------------------------
# Raw parameters (PyTorch-style init) and BN-folded / padded kernel parameters
# -----------------------------------------------------------------------------
def init_gnn_params(key, num_layer, emb_dim):
    params = []
    H = 2 * emb_dim
    lim1 = emb_dim ** -0.5
    lim2 = H ** -0.5
    for _ in range(num_layer):
        key, k1, k2, k3, k4 = jax.random.split(key, 5)
        p = {
            "eps": 0.0,  # GINConv eps initialized to 0
            "w1": jax.random.uniform(k1, (emb_dim, H), jnp.float32, -lim1, lim1),
            "b1": jax.random.uniform(k2, (H,), jnp.float32, -lim1, lim1),
            "bn1_g": jnp.ones((H,), jnp.float32),
            "bn1_b": jnp.zeros((H,), jnp.float32),
            "bn1_m": jnp.zeros((H,), jnp.float32),
            "bn1_v": jnp.ones((H,), jnp.float32),
            "w2": jax.random.uniform(k3, (H, emb_dim), jnp.float32, -lim2, lim2),
            "b2": jax.random.uniform(k4, (emb_dim,), jnp.float32, -lim2, lim2),
            # GNN_node per-layer BatchNorm1d(emb_dim), fresh defaults (eval mode)
            "bn2_g": jnp.ones((emb_dim,), jnp.float32),
            "bn2_b": jnp.zeros((emb_dim,), jnp.float32),
            "bn2_m": jnp.zeros((emb_dim,), jnp.float32),
            "bn2_v": jnp.ones((emb_dim,), jnp.float32),
        }
        params.append(p)
    return params


def build_kernel_params(raw_params, emb_dim):
    """Fold eval-mode BNs into the Linears, pad to lane-dense shapes, stack layers."""
    bn_eps = 1e-5
    D = emb_dim
    H = 2 * emb_dim
    Dp = _round_up(D, 128)
    Hp = _round_up(H, 128)
    w1s, b1s, w2s, b2s, scales = [], [], [], [], []
    for p in raw_params:
        s1 = p["bn1_g"] / jnp.sqrt(p["bn1_v"] + bn_eps)
        w1f = p["w1"] * s1[None, :]
        b1f = (p["b1"] - p["bn1_m"]) * s1 + p["bn1_b"]
        s2 = p["bn2_g"] / jnp.sqrt(p["bn2_v"] + bn_eps)
        w2f = p["w2"] * s2[None, :]
        b2f = (p["b2"] - p["bn2_m"]) * s2 + p["bn2_b"]

        w1s.append(jnp.zeros((Dp, Hp), jnp.float32).at[:D, :H].set(w1f)
                   .astype(jnp.bfloat16))
        b1s.append(jnp.zeros((1, Hp), jnp.float32).at[0, :H].set(b1f))
        w2s.append(jnp.zeros((Hp, Dp), jnp.float32).at[:H, :D].set(w2f)
                   .astype(jnp.bfloat16))
        b2s.append(jnp.zeros((1, Dp), jnp.float32).at[0, :D].set(b2f))
        scales.append(1.0 + p["eps"])
    return {
        "w1": jnp.stack(w1s),                       # (L, Dp, Hp) bf16
        "b1": jnp.stack(b1s),                       # (L, 1, Hp)  f32
        "w2": jnp.stack(w2s),                       # (L, Hp, Dp) bf16
        "b2": jnp.stack(b2s),                       # (L, 1, Dp)  f32
        "scales": jnp.array(scales, jnp.float32),   # (L,)        f32
    }


# -----------------------------------------------------------------------------
# Full GNN_node forward (gnn_type='gin', JK='last', residual=False, eval mode)
# -----------------------------------------------------------------------------
def gnn_node_forward(x_int, edge_index, edge_attr_int, raw_params, *, edge_block=256):
    N, D = x_int.shape
    E = edge_attr_int.shape[0]
    L = len(raw_params)
    assert L >= 1, "Number of GNN layers must be at least 1."

    kp = build_kernel_params(raw_params, D)
    Dp = kp["w1"].shape[1]
    Hp = kp["w1"].shape[2]

    # N padded to a multiple of 8 with at least one spare dummy row for padded edges.
    N_pad = _round_up(N + 1, 8)
    TE = _round_up(min(edge_block, _round_up(E, 8)), 8)
    E_pad = _round_up(E, TE)
    num_e_blocks = E_pad // TE

    # Padded, lane-dense inputs (x.long()/edge_attr.long() -> f32; identity encoders).
    x_pad = jnp.zeros((N_pad, Dp), jnp.float32).at[:N, :D].set(
        x_int.astype(jnp.int32).astype(jnp.float32))
    ea_pad = jnp.zeros((E_pad, Dp), jnp.float32).at[:E, :D].set(
        edge_attr_int.astype(jnp.int32).astype(jnp.float32))
    src = jnp.zeros((E_pad,), jnp.int32).at[:E].set(edge_index[0].astype(jnp.int32))
    # Padded edges scatter into the dummy row N (>= N, discarded by the wrapper).
    dst = jnp.full((E_pad,), N, jnp.int32).at[:E].set(edge_index[1].astype(jnp.int32))

    flops = int(L * (4 * N_pad * Dp * Hp + 3 * E_pad * Dp + 4 * N_pad * Dp))
    bytes_accessed = int(
        x_pad.size * 4 + L * ea_pad.size * 4 + L * N_pad * Dp * 4
        + kp["w1"].size * 2 + kp["w2"].size * 2
        + (kp["b1"].size + kp["b2"].size) * 4 + (src.size + dst.size) * 4)

    grid_spec = pltpu.PrefetchScalarGridSpec(
        num_scalar_prefetch=2,                       # src, dst -> SMEM
        grid=(L, num_e_blocks),
        in_specs=[
            pl.BlockSpec(memory_space=pltpu.MemorySpace.SMEM),             # (L,) 1+eps
            pl.BlockSpec((N_pad, Dp), lambda l, e, *_: (0, 0)),            # x (resident)
            pl.BlockSpec((TE, Dp), lambda l, e, *_: (e, 0)),               # edge_attr tile
            pl.BlockSpec((None, Dp, Hp), lambda l, e, *_: (l, 0, 0)),      # W1 (folded)
            pl.BlockSpec((None, 1, Hp), lambda l, e, *_: (l, 0, 0)),       # b1 (folded)
            pl.BlockSpec((None, Hp, Dp), lambda l, e, *_: (l, 0, 0)),      # W2 (folded)
            pl.BlockSpec((None, 1, Dp), lambda l, e, *_: (l, 0, 0)),       # b2 (folded)
        ],
        out_specs=pl.BlockSpec((None, N_pad, Dp), lambda l, e, *_: (l, 0, 0)),
        scratch_shapes=[pltpu.VMEM((N_pad, Dp), jnp.float32),   # resident h
                        pltpu.VMEM((N_pad, Dp), jnp.float32)],  # aggregation accumulator
    )

    out = pl.pallas_call(
        _gin_fused_kernel,
        out_shape=jax.ShapeDtypeStruct((L, N_pad, Dp), jnp.float32),
        grid_spec=grid_spec,
        compiler_params=pltpu.CompilerParams(
            # Both grid axes carry VMEM-resident state (h across layers, the
            # aggregation accumulator across edge tiles), so they must stay
            # sequential; there is no parallel axis to shard on v7x megacore in
            # this fused formulation.
            dimension_semantics=("arbitrary", "arbitrary"),
            vmem_limit_bytes=32 * 1024 * 1024,   # explicit sizing, fits v7x's 64 MiB VMEM
        ),
        cost_estimate=pl.CostEstimate(flops=flops, transcendentals=0,
                                      bytes_accessed=bytes_accessed),
    )(src, dst, kp["scales"], x_pad, ea_pad,
      kp["w1"], kp["b1"], kp["w2"], kp["b2"])

    # Corresponds to h_list[1:] in the PyTorch module.
    return [out[l, :N, :D] for l in range(L)]


# -----------------------------------------------------------------------------
# Pure-JAX f32 reference (uses the *raw* params, BN applied explicitly)
# -----------------------------------------------------------------------------
def reference_forward(x_int, edge_index, edge_attr_int, raw_params):
    bn_eps = 1e-5
    h = x_int.astype(jnp.float32)
    ea = edge_attr_int.astype(jnp.float32)
    src, dst = edge_index[0], edge_index[1]
    L = len(raw_params)
    outs = []
    for li, p in enumerate(raw_params):
        msg = jnp.maximum(h[src] + ea, 0.0)
        agg = jax.ops.segment_sum(msg, dst, num_segments=h.shape[0])
        t = (1.0 + p["eps"]) * h + agg
        z = t @ p["w1"] + p["b1"]
        z = (z - p["bn1_m"]) / jnp.sqrt(p["bn1_v"] + bn_eps) * p["bn1_g"] + p["bn1_b"]
        z = jnp.maximum(z, 0.0)
        y = z @ p["w2"] + p["b2"]
        y = (y - p["bn2_m"]) / jnp.sqrt(p["bn2_v"] + bn_eps) * p["bn2_g"] + p["bn2_b"]
        if li < L - 1:
            y = jnp.maximum(y, 0.0)
        h = y
        outs.append(y)
    return outs


if __name__ == "__main__":
    num_layer = 2
    emb_dim = 32
    N = 16   # nodes
    E = 30   # edges (not a multiple of the edge tile -> exercises padding path)

    key = jax.random.PRNGKey(0)
    k_x, k_ea, k_ei, k_p = jax.random.split(key, 4)

    x_int = jax.random.randint(k_x, (N, emb_dim), 0, 5, dtype=jnp.int32)
    edge_attr_int = jax.random.randint(k_ea, (E, emb_dim), 0, 3, dtype=jnp.int32)
    edge_index = jax.random.randint(k_ei, (2, E), 0, N, dtype=jnp.int32)

    raw_params = init_gnn_params(k_p, num_layer, emb_dim)

    # edge_block=16 -> 2 edge tiles, exercising the cross-tile accumulator path.
    outs = gnn_node_forward(x_int, edge_index, edge_attr_int, raw_params, edge_block=16)
    outs = [jax.block_until_ready(o) for o in outs]

    refs = reference_forward(x_int, edge_index, edge_attr_int, raw_params)
    for o, r in zip(outs, refs):
        assert o.shape == (N, emb_dim) and o.dtype == jnp.float32
        denom = float(jnp.maximum(jnp.max(jnp.abs(r)), 1.0))
        rel = float(jnp.max(jnp.abs(o - r))) / denom
        assert rel < 5e-2, f"numerical mismatch vs f32 reference: rel={rel}"

    print("KERNEL_OK")
</pallas_src>

<mosaic_0001>
module attributes {stable_mosaic.version = 11 : i64} {
  func.func @_gin_fused_kernel(%arg0: i32, %arg1: i32, %arg2: memref<32xi32, #tpu.memory_space<smem>>, %arg3: memref<32xi32, #tpu.memory_space<smem>>, %arg4: memref<2xf32, #tpu.memory_space<smem>>, %arg5: memref<24x128xf32, #tpu.memory_space<vmem>>, %arg6: memref<16x128xf32, #tpu.memory_space<vmem>>, %arg7: memref<1x128x128xbf16, #tpu.memory_space<vmem>>, %arg8: memref<1x1x128xf32, #tpu.memory_space<vmem>>, %arg9: memref<1x128x128xbf16, #tpu.memory_space<vmem>>, %arg10: memref<1x1x128xf32, #tpu.memory_space<vmem>>, %arg11: memref<1x24x128xf32, #tpu.memory_space<vmem>>, %arg12: memref<24x128xf32, #tpu.memory_space<vmem>>, %arg13: memref<24x128xf32, #tpu.memory_space<vmem>>) attributes {dimension_semantics = [#tpu.dimension_semantics<arbitrary>, #tpu.dimension_semantics<arbitrary>], iteration_bounds = array<i64: 2, 2>, scalar_prefetch = 2 : i64, scratch_operands = 2 : i64, tpu.core_type = #tpu.core_type<tc>, window_params = [{transform_indices = @transform_0, window_bounds = array<i64: 2>}, {pipeline_mode = #tpu.pipeline_mode<synchronous>, transform_indices = @transform_1, window_bounds = array<i64: 24, 128>}, {transform_indices = @transform_2, window_bounds = array<i64: 16, 128>}, {transform_indices = @transform_3, window_bounds = array<i64: 1, 128, 128>}, {transform_indices = @transform_4, window_bounds = array<i64: 1, 1, 128>}, {transform_indices = @transform_5, window_bounds = array<i64: 1, 128, 128>}, {transform_indices = @transform_6, window_bounds = array<i64: 1, 1, 128>}, {transform_indices = @transform_7, window_bounds = array<i64: 1, 24, 128>}]} {
    %c0_i32 = arith.constant 0 : i32
    %0 = arith.cmpi eq, %arg0, %c0_i32 : i32
    %c0_i32_0 = arith.constant 0 : i32
    %1 = arith.cmpi eq, %arg1, %c0_i32_0 : i32
    %2 = arith.andi %0, %1 : i1
    %3 = arith.extui %2 : i1 to i32
    %c0_i32_1 = arith.constant 0 : i32
    %4 = arith.cmpi ne, %3, %c0_i32_1 : i32
    scf.if %4 {
      %c0 = arith.constant 0 : index
      %c0_9 = arith.constant 0 : index
      %13 = vector.load %arg5[%c0, %c0_9] : memref<24x128xf32, #tpu.memory_space<vmem>>, vector<24x128xf32>
      %c0_10 = arith.constant 0 : index
      %c0_11 = arith.constant 0 : index
      %14 = vector.load %arg12[%c0_10, %c0_11] : memref<24x128xf32, #tpu.memory_space<vmem>>, vector<24x128xf32>
      tpu.vector_store %arg12[%c0_10, %c0_11], %13 {strides = array<i32>} : memref<24x128xf32, #tpu.memory_space<vmem>>, vector<24x128xf32>,
    } else {
    }
    %c0_i32_2 = arith.constant 0 : i32
    %5 = arith.cmpi eq, %arg1, %c0_i32_2 : i32
    %6 = arith.extui %5 : i1 to i32
    %c0_i32_3 = arith.constant 0 : i32
    %7 = arith.cmpi ne, %6, %c0_i32_3 : i32
    scf.if %7 {
      %cst = arith.constant 0.000000e+00 : f32
      %13 = vector.broadcast %cst : f32 to vector<24x128xf32>
      %c0 = arith.constant 0 : index
      %c0_9 = arith.constant 0 : index
      %14 = vector.load %arg13[%c0, %c0_9] : memref<24x128xf32, #tpu.memory_space<vmem>>, vector<24x128xf32>
      tpu.vector_store %arg13[%c0, %c0_9], %13 {strides = array<i32>} : memref<24x128xf32, #tpu.memory_space<vmem>>, vector<24x128xf32>,
    } else {
    }
    %c16_i32 = arith.constant 16 : i32
    %8 = arith.muli %arg1, %c16_i32 : i32
    %c0_i32_4 = arith.constant 0 : i32
    %c16_i32_5 = arith.constant 16 : i32
    %9 = arith.addi %c0_i32_4, %c16_i32_5 : i32
    %c1_i32 = arith.constant 1 : i32
    scf.for %arg14 = %c0_i32_4 to %9 step %c1_i32  : i32 {
      %13 = arith.addi %8, %arg14 : i32
      %14 = arith.index_cast %13 : i32 to index
      %15 = memref.load %arg2[%14] : memref<32xi32, #tpu.memory_space<smem>>
      %16 = arith.addi %8, %arg14 : i32
      %17 = arith.index_cast %16 : i32 to index
      %18 = memref.load %arg3[%17] : memref<32xi32, #tpu.memory_space<smem>>
      %19 = arith.index_cast %15 : i32 to index
      %c0 = arith.constant 0 : index
      %20 = vector.load %arg12[%19, %c0] : memref<24x128xf32, #tpu.memory_space<vmem>>, vector<1x128xf32>
      %21 = arith.index_cast %arg14 : i32 to index
      %c0_9 = arith.constant 0 : index
      %22 = vector.load %arg6[%21, %c0_9] : memref<16x128xf32, #tpu.memory_space<vmem>>, vector<1x128xf32>
      %23 = arith.addf %20, %22 : vector<1x128xf32>
      %cst = arith.constant 0.000000e+00 : f32
      %24 = vector.broadcast %cst : f32 to vector<1x128xf32>
      %25 = arith.maximumf %23, %24 : vector<1x128xf32>
      %26 = arith.index_cast %18 : i32 to index
      %c0_10 = arith.constant 0 : index
      %27 = vector.load %arg13[%26, %c0_10] : memref<24x128xf32, #tpu.memory_space<vmem>>, vector<1x128xf32>
      %28 = arith.addf %27, %25 : vector<1x128xf32>
      %29 = arith.index_cast %18 : i32 to index
      %c0_11 = arith.constant 0 : index
      %30 = vector.load %arg13[%29, %c0_11] : memref<24x128xf32, #tpu.memory_space<vmem>>, vector<1x128xf32>
      tpu.vector_store %arg13[%29, %c0_11], %28 {strides = array<i32>} : memref<24x128xf32, #tpu.memory_space<vmem>>, vector<1x128xf32>,
    }
    %c16_i32_6 = arith.constant 16 : i32
    %c1_i32_7 = arith.constant 1 : i32
    %10 = arith.cmpi eq, %arg1, %c1_i32_7 : i32
    %11 = arith.extui %10 : i1 to i32
    %c0_i32_8 = arith.constant 0 : i32
    %12 = arith.cmpi ne, %11, %c0_i32_8 : i32
    scf.if %12 {
      %13 = arith.index_cast %arg0 : i32 to index
      %14 = memref.load %arg4[%13] : memref<2xf32, #tpu.memory_space<smem>>
      %c0 = arith.constant 0 : index
      %c0_9 = arith.constant 0 : index
      %15 = vector.load %arg12[%c0, %c0_9] : memref<24x128xf32, #tpu.memory_space<vmem>>, vector<24x128xf32>
      %16 = vector.broadcast %14 : f32 to vector<24x128xf32>
      %17 = arith.mulf %16, %15 : vector<24x128xf32>
      %c0_10 = arith.constant 0 : index
      %c0_11 = arith.constant 0 : index
      %18 = vector.load %arg13[%c0_10, %c0_11] : memref<24x128xf32, #tpu.memory_space<vmem>>, vector<24x128xf32>
      %19 = arith.addf %17, %18 : vector<24x128xf32>
      %20 = arith.truncf %19 : vector<24x128xf32> to vector<24x128xbf16>
      %c0_12 = arith.constant 0 : index
      %c0_13 = arith.constant 0 : index
      %c0_14 = arith.constant 0 : index
      %21 = vector.load %arg7[%c0_12, %c0_13, %c0_14] : memref<1x128x128xbf16, #tpu.memory_space<vmem>>, vector<1x128x128xbf16>
      %22 = vector.shape_cast %21 : vector<1x128x128xbf16> to vector<128x128xbf16>
      %cst = arith.constant dense<0.000000e+00> : vector<24x128xf32>
      %23 = tpu.matmul %20, %22, %cst {dimension_numbers = #tpu.dot_dimension_numbers<[1], [0], [0], [1], [0, 0, 1, 1], [], []>} : vector<24x128xbf16>, vector<128x128xbf16>, vector<24x128xf32> -> vector<24x128xf32>
      %c0_15 = arith.constant 0 : index
      %c0_16 = arith.constant 0 : index
      %c0_17 = arith.constant 0 : index
      %24 = vector.load %arg8[%c0_15, %c0_16, %c0_17] : memref<1x1x128xf32, #tpu.memory_space<vmem>>, vector<1x1x128xf32>
      %25 = vector.shape_cast %24 : vector<1x1x128xf32> to vector<1x128xf32>
      %26 = vector.broadcast %25 : vector<1x128xf32> to vector<24x128xf32>
      %27 = arith.addf %23, %26 : vector<24x128xf32>
      %cst_18 = arith.constant 0.000000e+00 : f32
      %28 = vector.broadcast %cst_18 : f32 to vector<24x128xf32>
      %29 = arith.maximumf %27, %28 : vector<24x128xf32>
      %30 = arith.truncf %29 : vector<24x128xf32> to vector<24x128xbf16>
      %c0_19 = arith.constant 0 : index
      %c0_20 = arith.constant 0 : index
      %c0_21 = arith.constant 0 : index
      %31 = vector.load %arg9[%c0_19, %c0_20, %c0_21] : memref<1x128x128xbf16, #tpu.memory_space<vmem>>, vector<1x128x128xbf16>
      %32 = vector.shape_cast %31 : vector<1x128x128xbf16> to vector<128x128xbf16>
      %cst_22 = arith.constant dense<0.000000e+00> : vector<24x128xf32>
      %33 = tpu.matmul %30, %32, %cst_22 {dimension_numbers = #tpu.dot_dimension_numbers<[1], [0], [0], [1], [0, 0, 1, 1], [], []>} : vector<24x128xbf16>, vector<128x128xbf16>, vector<24x128xf32> -> vector<24x128xf32>
      %c0_23 = arith.constant 0 : index
      %c0_24 = arith.constant 0 : index
      %c0_25 = arith.constant 0 : index
      %34 = vector.load %arg10[%c0_23, %c0_24, %c0_25] : memref<1x1x128xf32, #tpu.memory_space<vmem>>, vector<1x1x128xf32>
      %35 = vector.shape_cast %34 : vector<1x1x128xf32> to vector<1x128xf32>
      %36 = vector.broadcast %35 : vector<1x128xf32> to vector<24x128xf32>
      %37 = arith.addf %33, %36 : vector<24x128xf32>
      %c1_i32_26 = arith.constant 1 : i32
      %38 = arith.cmpi eq, %arg0, %c1_i32_26 : i32
      %39 = arith.extui %38 : i1 to i32
      %c0_i32_27 = arith.constant 0 : i32
      %40 = arith.cmpi ne, %39, %c0_i32_27 : i32
      scf.if %40 {
        %c0_30 = arith.constant 0 : index
        %c0_31 = arith.constant 0 : index
        %c0_32 = arith.constant 0 : index
        %44 = vector.load %arg11[%c0_30, %c0_31, %c0_32] : memref<1x24x128xf32, #tpu.memory_space<vmem>>, vector<1x24x128xf32>
        %45 = vector.shape_cast %44 : vector<1x24x128xf32> to vector<24x128xf32>
        %46 = vector.shape_cast %37 : vector<24x128xf32> to vector<1x24x128xf32>
        tpu.vector_store %arg11[%c0_30, %c0_31, %c0_32], %46 {strides = array<i32>} : memref<1x24x128xf32, #tpu.memory_space<vmem>>, vector<1x24x128xf32>,
      } else {
      }
      %c1_i32_28 = arith.constant 1 : i32
      %41 = arith.cmpi slt, %arg0, %c1_i32_28 : i32
      %42 = arith.extui %41 : i1 to i32
      %c0_i32_29 = arith.constant 0 : i32
      %43 = arith.cmpi ne, %42, %c0_i32_29 : i32
      scf.if %43 {
        %cst_30 = arith.constant 0.000000e+00 : f32
        %44 = vector.broadcast %cst_30 : f32 to vector<24x128xf32>
        %45 = arith.maximumf %37, %44 : vector<24x128xf32>
        %c0_31 = arith.constant 0 : index
        %c0_32 = arith.constant 0 : index
        %c0_33 = arith.constant 0 : index
        %46 = vector.load %arg11[%c0_31, %c0_32, %c0_33] : memref<1x24x128xf32, #tpu.memory_space<vmem>>, vector<1x24x128xf32>
        %47 = vector.shape_cast %46 : vector<1x24x128xf32> to vector<24x128xf32>
        %48 = vector.shape_cast %45 : vector<24x128xf32> to vector<1x24x128xf32>
        tpu.vector_store %arg11[%c0_31, %c0_32, %c0_33], %48 {strides = array<i32>} : memref<1x24x128xf32, #tpu.memory_space<vmem>>, vector<1x24x128xf32>,
        %c0_34 = arith.constant 0 : index
        %c0_35 = arith.constant 0 : index
        %49 = vector.load %arg12[%c0_34, %c0_35] : memref<24x128xf32, #tpu.memory_space<vmem>>, vector<24x128xf32>
        tpu.vector_store %arg12[%c0_34, %c0_35], %45 {strides = array<i32>} : memref<24x128xf32, #tpu.memory_space<vmem>>, vector<24x128xf32>,
      } else {
      }
    } else {
    }
    return
  }
  func.func @transform_0(%arg0: i32, %arg1: i32, %arg2: memref<32xi32, #tpu.memory_space<smem>>, %arg3: memref<32xi32, #tpu.memory_space<smem>>) -> i32 {
    %c0_i32 = arith.constant 0 : i32
    %c0_i32_0 = arith.constant 0 : i32
    return %c0_i32 : i32
  }
  func.func @transform_1(%arg0: i32, %arg1: i32, %arg2: memref<32xi32, #tpu.memory_space<smem>>, %arg3: memref<32xi32, #tpu.memory_space<smem>>) -> (i32, i32) {
    %c0_i32 = arith.constant 0 : i32
    %c0_i32_0 = arith.constant 0 : i32
    %c0_i32_1 = arith.constant 0 : i32
    return %c0_i32, %c0_i32_0 : i32, i32
  }
  func.func @transform_2(%arg0: i32, %arg1: i32, %arg2: memref<32xi32, #tpu.memory_space<smem>>, %arg3: memref<32xi32, #tpu.memory_space<smem>>) -> (i32, i32) {
    %c0_i32 = arith.constant 0 : i32
    %c0_i32_0 = arith.constant 0 : i32
    return %arg1, %c0_i32 : i32, i32
  }
  func.func @transform_3(%arg0: i32, %arg1: i32, %arg2: memref<32xi32, #tpu.memory_space<smem>>, %arg3: memref<32xi32, #tpu.memory_space<smem>>) -> (i32, i32, i32) {
    %c0_i32 = arith.constant 0 : i32
    %c0_i32_0 = arith.constant 0 : i32
    %c0_i32_1 = arith.constant 0 : i32
    return %arg0, %c0_i32, %c0_i32_0 : i32, i32, i32
  }
  func.func @transform_4(%arg0: i32, %arg1: i32, %arg2: memref<32xi32, #tpu.memory_space<smem>>, %arg3: memref<32xi32, #tpu.memory_space<smem>>) -> (i32, i32, i32) {
    %c0_i32 = arith.constant 0 : i32
    %c0_i32_0 = arith.constant 0 : i32
    %c0_i32_1 = arith.constant 0 : i32
    return %arg0, %c0_i32, %c0_i32_0 : i32, i32, i32
  }
  func.func @transform_5(%arg0: i32, %arg1: i32, %arg2: memref<32xi32, #tpu.memory_space<smem>>, %arg3: memref<32xi32, #tpu.memory_space<smem>>) -> (i32, i32, i32) {
    %c0_i32 = arith.constant 0 : i32
    %c0_i32_0 = arith.constant 0 : i32
    %c0_i32_1 = arith.constant 0 : i32
    return %arg0, %c0_i32, %c0_i32_0 : i32, i32, i32
  }
  func.func @transform_6(%arg0: i32, %arg1: i32, %arg2: memref<32xi32, #tpu.memory_space<smem>>, %arg3: memref<32xi32, #tpu.memory_space<smem>>) -> (i32, i32, i32) {
    %c0_i32 = arith.constant 0 : i32
    %c0_i32_0 = arith.constant 0 : i32
    %c0_i32_1 = arith.constant 0 : i32
    return %arg0, %c0_i32, %c0_i32_0 : i32, i32, i32
  }
  func.func @transform_7(%arg0: i32, %arg1: i32, %arg2: memref<32xi32, #tpu.memory_space<smem>>, %arg3: memref<32xi32, #tpu.memory_space<smem>>) -> (i32, i32, i32) {
    %c0_i32 = arith.constant 0 : i32
    %c0_i32_0 = arith.constant 0 : i32
    %c0_i32_1 = arith.constant 0 : i32
    return %arg0, %c0_i32, %c0_i32_0 : i32, i32, i32
  }
}

</mosaic_0001>

<llo_original>
// kernel: tpu_custom_call.1
$region0: #{tpu_custom_call.1}
  #allocation0 [shape = 'u32[]', space=smem, size = 0x4, offset = 0x4, fixed_abs, tag = 'smem constant byte address 0x4 - core index']
  #allocation1 [shape = 'u32[144,128]{1,0:T(1,128)}', space=vmem, size = 0x12000, scoped, tag = 'internal scratch']
  #allocation2 [shape = 'f32[24,128]{1,0:T(8,128)}', space=vmem, size = 0x3000, scoped, tag = 'scratch operand']
  #allocation3 [shape = 'f32[24,128]{1,0:T(8,128)}', space=vmem, size = 0x3000, scoped, tag = 'scratch operand']
  #allocation4 [shape = 's32[1]{0}', space=sflag, size = 0x4, scoped, tag = 'scoped memory for tpu_custom_call.1']
  #allocation5 [shape = 'u8[512]{0}', space=smem, size = 0x200, scoped, tag = 'prefetched SMEM operand 0']
  #allocation6 [shape = 'u8[512]{0}', space=smem, size = 0x200, scoped, tag = 'prefetched SMEM operand 1']
  %s0 = inlined_call_operand.hbm [shape: s32[32], index: 0, kind: input, shape index: {}]
  %s1 = inlined_call_operand.vmem [shape: s32[32], index: 1, kind: input, shape index: {}]
  %s2 = inlined_call_operand.vmem [shape: f32[2], index: 2, kind: input, shape index: {}]
  %s3 = inlined_call_operand.hbm [shape: f32[24,128], index: 3, kind: input, shape index: {}]
  %s4 = inlined_call_operand.hbm [shape: f32[32,128], index: 4, kind: input, shape index: {}]
  %s5 = inlined_call_operand.hbm [shape: bf16[2,128,128], index: 5, kind: input, shape index: {}]
  %s6 = inlined_call_operand.vmem [shape: f32[2,1,128], index: 6, kind: input, shape index: {}]
  %s7 = inlined_call_operand.hbm [shape: bf16[2,128,128], index: 7, kind: input, shape index: {}]
  %s8 = inlined_call_operand.vmem [shape: f32[2,1,128], index: 8, kind: input, shape index: {}]
  %s9 = inlined_call_operand.hbm [shape: f32[2,24,128], index: 9, kind: output, shape index: {}]
  %s10 = sld [smem:[#allocation0]]
  $region108: #{tpu_custom_call.1} parent=0
    _
  %s12 = ssub.s32 1, %s10
  %s13 = scalar_select 0, %s12, %s10
  %15 = dma.hbm_to_smem %s0, 16, [#allocation5], [#allocation4]
  %s16 = sshll.u32 %s1, 4
  %s17 = int_to_ptr.vmem [resolvable:$true] %s16
  %19 = dma.vmem_to_smem %s17, 16, [#allocation6], [#allocation4]
  %20 = dma.done [#allocation4], 32
  %21 = sfence
  $region1: #{tpu_custom_call.1} parent=0
    #allocation7 [shape = 'u8[512]{0}', space=smem, size = 0x200, scoped, tag = 'input window, operand 2, single buffered']
    #allocation8 [shape = 's32[2]{0}', space=sflag, size = 0x8, scoped, tag = 'scoped memory for tpu_custom_call.1']
    #allocation9 [shape = 's32[2]{0}', space=sflag, size = 0x8, scoped, tag = 'scoped memory for tpu_custom_call.1']
    #allocation10 [shape = 's32[2]{0}', space=sflag, size = 0x8, scoped, tag = 'scoped memory for tpu_custom_call.1']
    #allocation11 [shape = 'u8[12288]{0}', space=vmem, size = 0x3000, scoped, tag = 'input window, operand 3, single buffered']
    #allocation12 [shape = 'u8[16384]{0}', space=vmem, size = 0x4000, scoped, tag = 'input window, operand 4']
    #allocation13 [shape = 's32[2]{0}', space=sflag, size = 0x8, scoped, tag = 'scoped memory for tpu_custom_call.1']
    #allocation14 [shape = 'u8[65536]{0}', space=vmem, size = 0x10000, scoped, tag = 'input window, operand 5']
    #allocation15 [shape = 'u8[65536]{0}', space=vmem, size = 0x10000, scoped, tag = 'input window, operand 7']
    #allocation16 [shape = 's32[2]{0}', space=sflag, size = 0x8, scoped, tag = 'scoped memory for tpu_custom_call.1']
    #allocation17 [shape = 'u8[24576]{0}', space=vmem, size = 0x6000, scoped, tag = 'output window, operand 0']
    %22 = vsyncpa [#allocation10], 0
    %23 = vsyncpa [#allocation8], 0
    %24 = vsyncpa [#allocation13], 0
    %s25 = scalar_lea.sflag [#allocation13], 1
    %26 = vsyncpa %s25, 0
    %27 = vsyncpa [#allocation16], 0
    %s28 = scalar_lea.sflag [#allocation16], 1
    %29 = vsyncpa %s28, 0
    %30 = vsyncpa [#allocation9], 0
    %s31 = scalar_lea.sflag [#allocation9], 1
    %32 = vsyncpa %s31, 0
    loop: start=0, step=1, limit=6
    $region2: #{tpu_custom_call.1} parent=1 // loop_pre_header
      _
    $region3: #{tpu_custom_call.1} parent=1 // loop_header
      %s34 = sphi 0, %s38
      %p35 = scmp.ge.s32.totalorder %s34, 6
      %s41 = sphi 0, %s53
      %s42 = sphi 0, %s49
      %s43 = sphi 0, %s41
      %s44 = sphi 0, %s42
      %s45 = sphi 0, %s43
      %s46 = sphi 0, %s44
      %s54 = sphi 0, %s54
      %s56 = sphi 0, %s54
      %s57 = sphi 0, %s56
      %s71 = sphi 0, %s57
      %s75 = sphi 0, %s75
      %s77 = sphi 0, %s75
      %s78 = sphi 0, %s77
      %s92 = sphi 0, %s78
      %s98 = sphi 0, %s100
      %s101 = sphi 0, %s98
      %s102 = sphi 0, %s101
      %s118 = sphi 0, %s102
      %s124 = sphi 0, %s126
      %s127 = sphi 0, %s124
      %s128 = sphi 0, %s127
      %s144 = sphi 0, %s128
      %s150 = sphi 0, %s152
      %s153 = sphi 0, %s150
      %s154 = sphi 0, %s153
      %s170 = sphi 0, %s154
      %s176 = sphi 0, %s178
      %s179 = sphi 0, %s176
      %s180 = sphi 0, %s179
      %s196 = sphi 0, %s180
      %s202 = sphi 0, %s204
      %s205 = sphi 0, %s202
      %s206 = sphi 0, %s205
      %s222 = sphi 0, %s206
      %s228 = sphi 0, %s230
      %s231 = sphi 0, %s228
      %s232 = sphi 0, %s231
      %s248 = sphi 0, %s232
    $region4: #{tpu_custom_call.1} parent=1 // loop_header_branch
      %37 = sbr.rel (%p35) target = $region8
    $region5: #{tpu_custom_call.1} parent=1 // loop_body
      %s39 = ssub.s32 %s34, 1
      %s40 = ssub.s32 %s34, 2
      %s47 = sadd.s32 1, %s42
      %p48 = scmp.ge.s32.totalorder %s47, 2
      %s49 = scalar_select %p48, 0, %s47
      %s50 = sadd.s32 1, %s41
      %s51 = scalar_select %p48, %s50, %s41
      %p52 = scmp.ge.s32.totalorder %s51, 2
      %s53 = scalar_select %p52, 0, %s51
      %s55 = sadd.s32 %s54, 1
      %p58 = scmp.eq.s32.totalorder %s34, 3
      %p59 = scmp.ne.s32.totalorder %s54, %s56
      %p60 = scmp.eq.s32.totalorder %s34, 0
      %p61 = por %p59, %p60
      %p62 = scmp.ne.s32.totalorder %s54, %s56
      %p63 = scmp.eq.s32.totalorder %s39, 3
      %p64 = por %p62, %p63
      %p65 = scmp.ne.s32.totalorder %s56, %s57
      %p66 = scmp.eq.s32.totalorder %s39, 0
      %p67 = por %p65, %p66
      %p68 = scmp.ne.s32.totalorder %s56, %s57
      %p69 = scmp.eq.s32.totalorder %s40, 3
      %p70 = por %p68, %p69
      %p72 = scmp.ne.s32.totalorder %s57, %s71
      %p73 = scmp.eq.s32.totalorder %s40, 0
      %p74 = por %p72, %p73
      %s76 = sadd.s32 %s75, 1
      %p79 = scmp.eq.s32.totalorder %s34, 3
      %p80 = scmp.ne.s32.totalorder %s75, %s77
      %p81 = scmp.eq.s32.totalorder %s34, 0
      %p82 = por %p80, %p81
      %p83 = scmp.ne.s32.totalorder %s75, %s77
      %p84 = scmp.eq.s32.totalorder %s39, 3
      %p85 = por %p83, %p84
      %p86 = scmp.ne.s32.totalorder %s77, %s78
      %p87 = scmp.eq.s32.totalorder %s39, 0
      %p88 = por %p86, %p87
      %p89 = scmp.ne.s32.totalorder %s77, %s78
      %p90 = scmp.eq.s32.totalorder %s40, 3
      %p91 = por %p89, %p90
      %p93 = scmp.ne.s32.totalorder %s78, %s92
      %p94 = scmp.eq.s32.totalorder %s40, 0
      %p95 = por %p93, %p94
      %s96 = ssub.s32 %s42, %s49
      %p97 = scmp.eq.s32.totalorder %s96, 0
      %s99 = sadd.s32 %s98, 1
      %s100 = scalar_select %p97, %s98, %s99
      %p103 = pneg %p97
      %p104 = scmp.eq.s32.totalorder %s34, 3
      %p105 = por %p103, %p104
      %p106 = scmp.ne.s32.totalorder %s98, %s101
      %p107 = scmp.eq.s32.totalorder %s34, 0
      %p108 = por %p106, %p107
      %p109 = scmp.ne.s32.totalorder %s98, %s101
      %p110 = scmp.eq.s32.totalorder %s39, 3
      %p111 = por %p109, %p110
      %p112 = scmp.ne.s32.totalorder %s101, %s102
      %p113 = scmp.eq.s32.totalorder %s39, 0
      %p114 = por %p112, %p113
      %p115 = scmp.ne.s32.totalorder %s101, %s102
      %p116 = scmp.eq.s32.totalorder %s40, 3
      %p117 = por %p115, %p116
      %p119 = scmp.ne.s32.totalorder %s102, %s118
      %p120 = scmp.eq.s32.totalorder %s40, 0
      %p121 = por %p119, %p120
      %s122 = ssub.s32 %s41, %s53
      %p123 = scmp.eq.s32.totalorder %s122, 0
      %s125 = sadd.s32 %s124, 1
      %s126 = scalar_select %p123, %s124, %s125
      %p129 = pneg %p123
      %p130 = scmp.eq.s32.totalorder %s34, 3
      %p131 = por %p129, %p130
      %p132 = scmp.ne.s32.totalorder %s124, %s127
      %p133 = scmp.eq.s32.totalorder %s34, 0
      %p134 = por %p132, %p133
      %p135 = scmp.ne.s32.totalorder %s124, %s127
      %p136 = scmp.eq.s32.totalorder %s39, 3
      %p137 = por %p135, %p136
      %p138 = scmp.ne.s32.totalorder %s127, %s128
      %p139 = scmp.eq.s32.totalorder %s39, 0
      %p140 = por %p138, %p139
      %p141 = scmp.ne.s32.totalorder %s127, %s128
      %p142 = scmp.eq.s32.totalorder %s40, 3
      %p143 = por %p141, %p142
      %p145 = scmp.ne.s32.totalorder %s128, %s144
      %p146 = scmp.eq.s32.totalorder %s40, 0
      %p147 = por %p145, %p146
      %s148 = ssub.s32 %s41, %s53
      %p149 = scmp.eq.s32.totalorder %s148, 0
      %s151 = sadd.s32 %s150, 1
      %s152 = scalar_select %p149, %s150, %s151
      %p155 = pneg %p149
      %p156 = scmp.eq.s32.totalorder %s34, 3
      %p157 = por %p155, %p156
      %p158 = scmp.ne.s32.totalorder %s150, %s153
      %p159 = scmp.eq.s32.totalorder %s34, 0
      %p160 = por %p158, %p159
      %p161 = scmp.ne.s32.totalorder %s150, %s153
      %p162 = scmp.eq.s32.totalorder %s39, 3
      %p163 = por %p161, %p162
      %p164 = scmp.ne.s32.totalorder %s153, %s154
      %p165 = scmp.eq.s32.totalorder %s39, 0
      %p166 = por %p164, %p165
      %p167 = scmp.ne.s32.totalorder %s153, %s154
      %p168 = scmp.eq.s32.totalorder %s40, 3
      %p169 = por %p167, %p168
      %p171 = scmp.ne.s32.totalorder %s154, %s170
      %p172 = scmp.eq.s32.totalorder %s40, 0
      %p173 = por %p171, %p172
      %s174 = ssub.s32 %s41, %s53
      %p175 = scmp.eq.s32.totalorder %s174, 0
      %s177 = sadd.s32 %s176, 1
      %s178 = scalar_select %p175, %s176, %s177
      %p181 = pneg %p175
      %p182 = scmp.eq.s32.totalorder %s34, 3
      %p183 = por %p181, %p182
      %p184 = scmp.ne.s32.totalorder %s176, %s179
      %p185 = scmp.eq.s32.totalorder %s34, 0
      %p186 = por %p184, %p185
      %p187 = scmp.ne.s32.totalorder %s176, %s179
      %p188 = scmp.eq.s32.totalorder %s39, 3
      %p189 = por %p187, %p188
      %p190 = scmp.ne.s32.totalorder %s179, %s180
      %p191 = scmp.eq.s32.totalorder %s39, 0
      %p192 = por %p190, %p191
      %p193 = scmp.ne.s32.totalorder %s179, %s180
      %p194 = scmp.eq.s32.totalorder %s40, 3
      %p195 = por %p193, %p194
      %p197 = scmp.ne.s32.totalorder %s180, %s196
      %p198 = scmp.eq.s32.totalorder %s40, 0
      %p199 = por %p197, %p198
      %s200 = ssub.s32 %s41, %s53
      %p201 = scmp.eq.s32.totalorder %s200, 0
      %s203 = sadd.s32 %s202, 1
      %s204 = scalar_select %p201, %s202, %s203
      %p207 = pneg %p201
      %p208 = scmp.eq.s32.totalorder %s34, 3
      %p209 = por %p207, %p208
      %p210 = scmp.ne.s32.totalorder %s202, %s205
      %p211 = scmp.eq.s32.totalorder %s34, 0
      %p212 = por %p210, %p211
      %p213 = scmp.ne.s32.totalorder %s202, %s205
      %p214 = scmp.eq.s32.totalorder %s39, 3
      %p215 = por %p213, %p214
      %p216 = scmp.ne.s32.totalorder %s205, %s206
      %p217 = scmp.eq.s32.totalorder %s39, 0
      %p218 = por %p216, %p217
      %p219 = scmp.ne.s32.totalorder %s205, %s206
      %p220 = scmp.eq.s32.totalorder %s40, 3
      %p221 = por %p219, %p220
      %p223 = scmp.ne.s32.totalorder %s206, %s222
      %p224 = scmp.eq.s32.totalorder %s40, 0
      %p225 = por %p223, %p224
      %s226 = ssub.s32 %s41, %s53
      %p227 = scmp.eq.s32.totalorder %s226, 0
      %s229 = sadd.s32 %s228, 1
      %s230 = scalar_select %p227, %s228, %s229
      %p233 = pneg %p227
      %p234 = scmp.eq.s32.totalorder %s34, 3
      %p235 = por %p233, %p234
      %p236 = scmp.ne.s32.totalorder %s228, %s231
      %p237 = scmp.eq.s32.totalorder %s34, 0
      %p238 = por %p236, %p237
      %p239 = scmp.ne.s32.totalorder %s228, %s231
      %p240 = scmp.eq.s32.totalorder %s39, 3
      %p241 = por %p239, %p240
      %p242 = scmp.ne.s32.totalorder %s231, %s232
      %p243 = scmp.eq.s32.totalorder %s39, 0
      %p244 = por %p242, %p243
      %p245 = scmp.ne.s32.totalorder %s231, %s232
      %p246 = scmp.eq.s32.totalorder %s40, 3
      %p247 = por %p245, %p246
      %p249 = scmp.ne.s32.totalorder %s232, %s248
      %p250 = scmp.eq.s32.totalorder %s40, 0
      %p251 = por %p249, %p250
      %p252 = scmp.le.s32.totalorder 1, %s34
      %p253 = scmp.lt.s32.totalorder %s34, 5
      %p254 = pnand %p252, %p253
      %p255 = pneg %p254
      // Predicated region
      $region9: #{tpu_custom_call.1} parent=5 // pred_check
        _
      $region10: #{tpu_custom_call.1} parent=5 // pred_check_branch
        %257 = sbr.rel (%p254) target = $region12
      $region11: #{tpu_custom_call.1} parent=5 // pred_region
        %s258 = ssub.s32 %s34, 1
        // Predicated region
        $region13: #{tpu_custom_call.1} parent=11 // pred_check
          %p259 = pneg %p67
        $region14: #{tpu_custom_call.1} parent=11 // pred_check_branch
          %261 = sbr.rel (%p259) target = $region16
        $region15: #{tpu_custom_call.1} parent=11 // pred_region
          %s263 = ssub.s32 16, 16
          %264 = vsyncadd [#allocation10], %s263
          %s266 = sshll.u32 %s2, 4
          %s267 = int_to_ptr.vmem [resolvable:$true] %s266
          %269 = dma.vmem_to_smem %s267, 16, [#allocation7], [#allocation10]
        $region16: #{tpu_custom_call.1} parent=11 // pred_fallthru
          _
        // Predicated region
        $region17: #{tpu_custom_call.1} parent=11 // pred_check
          %p270 = pneg %p88
        $region18: #{tpu_custom_call.1} parent=11 // pred_check_branch
          %272 = sbr.rel (%p270) target = $region20
        $region19: #{tpu_custom_call.1} parent=11 // pred_region
          %s274 = ssub.s32 384, 384
          %275 = vsyncadd [#allocation8], %s274
          %s276 = sshll.u32 [#allocation11], 4
          %s277 = int_to_ptr.vmem [resolvable:$true] %s276
          %282 = dma.hbm_to_vmem [thread:$0]  %s3, 384, %s277, [#allocation8], 128, 128, 8
        $region20: #{tpu_custom_call.1} parent=11 // pred_fallthru
          _
      $region12: #{tpu_custom_call.1} parent=5 // pred_fallthru
        _
      %p283 = scmp.lt.s32.totalorder %s34, 4
      // Predicated region
      $region21: #{tpu_custom_call.1} parent=5 // pred_check
        %p284 = pneg %p283
      $region22: #{tpu_custom_call.1} parent=5 // pred_check_branch
        %286 = sbr.rel (%p284) target = $region24
      $region23: #{tpu_custom_call.1} parent=5 // pred_region
        // Predicated region
        $region25: #{tpu_custom_call.1} parent=23 // pred_check
          %p287 = pneg %p108
        $region26: #{tpu_custom_call.1} parent=23 // pred_check_branch
          %289 = sbr.rel (%p287) target = $region28
        $region27: #{tpu_custom_call.1} parent=23 // pred_region
          %s290 = sand.u32 %s34, 1
          %s291 = scalar_lea.sflag [#allocation13], %s290
          %s292 = sand.u32 %s98, 1
          %s293 = smul.addr %s292, 16
          %s294 = scalar_lea.vmem [#allocation12], %s293
          %s295 = smul.u32 2, %s42
          %s297 = ssub.s32 256, 256
          %298 = vsyncadd %s291, %s297
          %s299 = smul.addr %s295, 128
          %s300 = scalar_lea.hbm %s4, %s299
          %s301 = sshll.u32 %s294, 4
          %s302 = int_to_ptr.vmem [resolvable:$true] %s301
          %307 = dma.hbm_to_vmem [thread:$0]  %s300, 256, %s302, %s291, 128, 128, 8
        $region28: #{tpu_custom_call.1} parent=23 // pred_fallthru
          _
        // Predicated region
        $region29: #{tpu_custom_call.1} parent=23 // pred_check
          %p308 = pneg %p134
        $region30: #{tpu_custom_call.1} parent=23 // pred_check_branch
          %310 = sbr.rel (%p308) target = $region32
        $region31: #{tpu_custom_call.1} parent=23 // pred_region
          %s311 = sand.u32 %s34, 1
          %s312 = scalar_lea.sflag [#allocation13], %s311
          %s313 = sand.u32 %s124, 1
          %s314 = smul.addr %s313, 64
          %s315 = scalar_lea.vmem [#allocation14], %s314
          %s317 = ssub.s32 1024, 1024
          %318 = vsyncadd %s312, %s317
          %s319 = smul.addr %s41, 16
          %s320 = smul.addr %s319, 64
          %s321 = scalar_lea.hbm %s5, %s320
          %s322 = sshll.u32 %s315, 4
          %s323 = int_to_ptr.vmem [resolvable:$true] %s322
          %328 = dma.hbm_to_vmem [thread:$0]  %s321, 1024, %s323, %s312, 64, 64, 4
        $region32: #{tpu_custom_call.1} parent=23 // pred_fallthru
          _
        // Predicated region
        $region33: #{tpu_custom_call.1} parent=23 // pred_check
          %p329 = pneg %p160
        $region34: #{tpu_custom_call.1} parent=23 // pred_check_branch
          %331 = sbr.rel (%p329) target = $region36
        $region35: #{tpu_custom_call.1} parent=23 // pred_region
          %p332 = scmp.lt.s32.totalorder %s41, 1
          %s333 = scalar_select %p332, %s41, 1
          %s334 = scalar_lea.vmem %s6, %s333
        $region36: #{tpu_custom_call.1} parent=23 // pred_fallthru
          _
        // Predicated region
        $region37: #{tpu_custom_call.1} parent=23 // pred_check
          %p335 = pneg %p186
        $region38: #{tpu_custom_call.1} parent=23 // pred_check_branch
          %337 = sbr.rel (%p335) target = $region40
        $region39: #{tpu_custom_call.1} parent=23 // pred_region
          %s338 = sand.u32 %s176, 1
          %s339 = scalar_lea.sflag [#allocation16], %s338
          %s340 = sand.u32 %s176, 1
          %s341 = smul.addr %s340, 64
          %s342 = scalar_lea.vmem [#allocation15], %s341
          %s344 = ssub.s32 1024, 1024
          %345 = vsyncadd %s339, %s344
          %s346 = smul.addr %s41, 16
          %s347 = smul.addr %s346, 64
          %s348 = scalar_lea.hbm %s7, %s347
          %s349 = sshll.u32 %s342, 4
          %s350 = int_to_ptr.vmem [resolvable:$true] %s349
          %355 = dma.hbm_to_vmem [thread:$0]  %s348, 1024, %s350, %s339, 64, 64, 4
        $region40: #{tpu_custom_call.1} parent=23 // pred_fallthru
          _
        // Predicated region
        $region41: #{tpu_custom_call.1} parent=23 // pred_check
          %p356 = pneg %p212
        $region42: #{tpu_custom_call.1} parent=23 // pred_check_branch
          %358 = sbr.rel (%p356) target = $region44
        $region43: #{tpu_custom_call.1} parent=23 // pred_region
          %p359 = scmp.lt.s32.totalorder %s41, 1
          %s360 = scalar_select %p359, %s41, 1
          %s361 = scalar_lea.vmem %s8, %s360
        $region44: #{tpu_custom_call.1} parent=23 // pred_fallthru
          _
      $region24: #{tpu_custom_call.1} parent=5 // pred_fallthru
        _
      %p362 = scmp.le.s32.totalorder 1, %s34
      %p363 = scmp.lt.s32.totalorder %s34, 5
      %p364 = pnand %p362, %p363
      %p365 = pneg %p364
      // Predicated region
      $region45: #{tpu_custom_call.1} parent=5 // pred_check
        _
      $region46: #{tpu_custom_call.1} parent=5 // pred_check_branch
        %367 = sbr.rel (%p364) target = $region48
      $region47: #{tpu_custom_call.1} parent=5 // pred_region
        %s368 = ssub.s32 %s34, 1
        // Predicated region
        $region49: #{tpu_custom_call.1} parent=47 // pred_check
          %p369 = pneg %p67
        $region50: #{tpu_custom_call.1} parent=47 // pred_check_branch
          %371 = sbr.rel (%p369) target = $region52
        $region51: #{tpu_custom_call.1} parent=47 // pred_region
          %372 = dma.done [#allocation10], 16
        $region52: #{tpu_custom_call.1} parent=47 // pred_fallthru
          _
        // Predicated region
        $region53: #{tpu_custom_call.1} parent=47 // pred_check
          %p373 = pneg %p88
        $region54: #{tpu_custom_call.1} parent=47 // pred_check_branch
          %375 = sbr.rel (%p373) target = $region56
        $region55: #{tpu_custom_call.1} parent=47 // pred_region
          %376 = dma.done [#allocation8], 384
        $region56: #{tpu_custom_call.1} parent=47 // pred_fallthru
          _
        %s377 = sand.u32 %s39, 1
        %s378 = scalar_lea.sflag [#allocation13], %s377
        %s379 = sand.u32 %s101, 1
        %s380 = smul.addr %s379, 16
        %s381 = scalar_lea.vmem [#allocation12], %s380
        // Predicated region
        $region57: #{tpu_custom_call.1} parent=47 // pred_check
          %p382 = pneg %p114
        $region58: #{tpu_custom_call.1} parent=47 // pred_check_branch
          %384 = sbr.rel (%p382) target = $region60
        $region59: #{tpu_custom_call.1} parent=47 // pred_region
          %385 = dma.done %s378, 256
        $region60: #{tpu_custom_call.1} parent=47 // pred_fallthru
          _
        %s386 = sand.u32 %s39, 1
        %s387 = scalar_lea.sflag [#allocation13], %s386
        %s388 = sand.u32 %s127, 1
        %s389 = smul.addr %s388, 64
        %s390 = scalar_lea.vmem [#allocation14], %s389
        // Predicated region
        $region61: #{tpu_custom_call.1} parent=47 // pred_check
          %p391 = pneg %p140
        $region62: #{tpu_custom_call.1} parent=47 // pred_check_branch
          %393 = sbr.rel (%p391) target = $region64
        $region63: #{tpu_custom_call.1} parent=47 // pred_region
          %394 = dma.done %s387, 1024
        $region64: #{tpu_custom_call.1} parent=47 // pred_fallthru
          _
        %s395 = sand.u32 %s179, 1
        %s396 = scalar_lea.sflag [#allocation16], %s395
        %s397 = sand.u32 %s179, 1
        %s398 = smul.addr %s397, 64
        %s399 = scalar_lea.vmem [#allocation15], %s398
        // Predicated region
        $region65: #{tpu_custom_call.1} parent=47 // pred_check
          %p400 = pneg %p192
        $region66: #{tpu_custom_call.1} parent=47 // pred_check_branch
          %402 = sbr.rel (%p400) target = $region68
        $region67: #{tpu_custom_call.1} parent=47 // pred_region
          %403 = dma.done %s396, 1024
        $region68: #{tpu_custom_call.1} parent=47 // pred_fallthru
          _
        %404 = sfence
        %p405 = pneg %p67
        %p406 = pneg %p64
        %p407 = pneg %p88
        %p408 = pneg %p85
        %s409 = sand.u32 %s39, 1
        %s410 = scalar_lea.sflag [#allocation13], %s409
        %s411 = sand.u32 %s101, 1
        %s412 = smul.addr %s411, 16
        %s413 = scalar_lea.vmem [#allocation12], %s412
        %p414 = pneg %p114
        %p415 = pneg %p111
        %s416 = sand.u32 %s39, 1
        %s417 = scalar_lea.sflag [#allocation13], %s416
        %s418 = sand.u32 %s127, 1
        %s419 = smul.addr %s418, 64
        %s420 = scalar_lea.vmem [#allocation14], %s419
        %p421 = pneg %p140
        %p422 = pneg %p137
        %p423 = scmp.lt.s32.totalorder %s43, 1
        %s424 = scalar_select %p423, %s43, 1
        %s425 = scalar_lea.vmem %s6, %s424
        %p426 = pneg %p166
        %p427 = pneg %p163
        %s428 = sand.u32 %s179, 1
        %s429 = scalar_lea.sflag [#allocation16], %s428
        %s430 = sand.u32 %s179, 1
        %s431 = smul.addr %s430, 64
        %s432 = scalar_lea.vmem [#allocation15], %s431
        %p433 = pneg %p192
        %p434 = pneg %p189
        %p435 = scmp.lt.s32.totalorder %s43, 1
        %s436 = scalar_select %p435, %s43, 1
        %s437 = scalar_lea.vmem %s8, %s436
        %p438 = pneg %p218
        %p439 = pneg %p215
        %p440 = pneg %p244
        %p441 = pneg %p241
        %s442 = sand.u32 %s231, 1
        %s443 = scalar_lea.sflag [#allocation9], %s442
        %s444 = sand.u32 %s231, 1
        %s445 = smul.addr %s444, 24
        %s446 = scalar_lea.vmem [#allocation17], %s445
        %s447 = smul.u32 2, %s44
        %p448 = scmp.lt.s32.totalorder %s43, 1
        %s449 = scalar_select %p448, %s43, 1
        %s450 = scalar_lea.vmem %s6, %s449
        %p451 = scmp.lt.s32.totalorder %s43, 1
        %s452 = scalar_select %p451, %s43, 1
        %s453 = scalar_lea.vmem %s8, %s452
        %p455 = scmp.eq.s32.totalorder %s43, 0
        %p456 = scmp.eq.s32.totalorder %s44, 0
        %p457 = pnand %p455, %p456
        %p458 = pneg %p457
        // Predicated region
        $region69: #{tpu_custom_call.1} parent=47 // pred_check
          _
        $region70: #{tpu_custom_call.1} parent=47 // pred_check_branch
          %460 = sbr.rel (%p457) target = $region72
        $region71: #{tpu_custom_call.1} parent=47 // pred_region
          %v461 = vld [vmem:[#allocation11] sm:$0xff]
          %v462 = vld [vmem:[#allocation11 + $0x8] sm:$0xff]
          %v463 = vld [vmem:[#allocation11 + $0x10] sm:$0xff]
          %464 = vst [vmem:[#allocation2] sm:$0xff] %v461
          %465 = vst [vmem:[#allocation2 + $0x8] sm:$0xff] %v462
          %466 = vst [vmem:[#allocation2 + $0x10] sm:$0xff] %v463
        $region72: #{tpu_custom_call.1} parent=47 // pred_fallthru
          _
        // Predicated region
        $region73: #{tpu_custom_call.1} parent=47 // pred_check
          %p467 = pneg %p456
        $region74: #{tpu_custom_call.1} parent=47 // pred_check_branch
          %469 = sbr.rel (%p467) target = $region76
        $region75: #{tpu_custom_call.1} parent=47 // pred_region
          %470 = vst [vmem:[#allocation3] sm:$0xff] 0.0
          %471 = vst [vmem:[#allocation3 + $0x8] sm:$0xff] 0.0
          %472 = vst [vmem:[#allocation3 + $0x10] sm:$0xff] 0.0
        $region76: #{tpu_custom_call.1} parent=47 // pred_fallthru
          _
        %s473 = smul.u32 %s44, 16
        loop: start=0, step=1, limit=16
        $region77: #{tpu_custom_call.1} parent=47 // loop_pre_header
          _
        $region78: #{tpu_custom_call.1} parent=47 // loop_header
          %s475 = sphi 0, %s479
          %p476 = scmp.ge.s32.totalorder %s475, 16
        $region79: #{tpu_custom_call.1} parent=47 // loop_header_branch
          %478 = sbr.rel (%p476) target = $region83
        $region80: #{tpu_custom_call.1} parent=47 // loop_body
          %s480 = sadd.s32 %s473, %s475
          %s481 = sld [smem:[#allocation5 + %s480]]
          %s482 = sld [smem:[#allocation6 + %s480]]
          %s483 = scalar_lea.vmem [#allocation2], %s481
          %v484 = vld [vmem:[%s483] sm:$0x1]
          %s485 = scalar_lea.vmem %s381, %s475 [#allocation12]
          %v486 = vld [vmem:[%s485] sm:$0x1]
          %v487 = vadd.f32 %v484, %v486
          %v488 = vmax.f32 %v487, 0.0
          %s489 = scalar_lea.vmem [#allocation3], %s482
          %v490 = vld [vmem:[%s489] sm:$0x1]
          %v491 = vadd.f32 %v490, %v488
          %492 = vst [vmem:[%s489] sm:$0x1] %v491
        $region81: #{tpu_custom_call.1} parent=47 // loop_footer
          %s479 = sadd.s32 1, %s475
        $region82: #{tpu_custom_call.1} parent=47 // loop_footer_branch
          %474 = sbr.rel target = $region78
        $region83: #{tpu_custom_call.1} parent=47 // loop_exit
          _
        %p493 = scmp.eq.s32.totalorder %s44, 1
        // Predicated region
        $region84: #{tpu_custom_call.1} parent=47 // pred_check
          %p494 = pneg %p493
        $region85: #{tpu_custom_call.1} parent=47 // pred_check_branch
          %496 = sbr.rel (%p494) target = $region87
        $region86: #{tpu_custom_call.1} parent=47 // pred_region
          %s497 = sld [smem:[#allocation7 + %s43]]
          %v498 = vld [vmem:[#allocation2] sm:$0xff]
          %v499 = vld [vmem:[#allocation2 + $0x8] sm:$0xff]
          %v500 = vld [vmem:[#allocation2 + $0x10] sm:$0xff]
          %v501 = vstv %s497
          %v502 = vmul.f32 %v501, %v498
          %v503 = vmul.f32 %v501, %v499
          %v504 = vmul.f32 %v501, %v500
          %v505 = vld [vmem:[#allocation3] sm:$0xff]
          %v506 = vld [vmem:[#allocation3 + $0x8] sm:$0xff]
          %v507 = vld [vmem:[#allocation3 + $0x10] sm:$0xff]
          %v508 = vadd.f32 %v502, %v505
          %v509 = vadd.f32 %v503, %v506
          %v510 = vadd.f32 %v504, %v507
          %v511 = vpack.c.bf16 %v509, %v508
          %v512 = vpack.c.bf16 %v510, %v510
          %v513 = vld [vmem:[%s390] sm:$0xf]
          %v514 = vld [vmem:[%s390 + $0x4] sm:$0xf]
          %v515 = vld [vmem:[%s390 + $0x8] sm:$0xf]
          %v516 = vld [vmem:[%s390 + $0xc] sm:$0xf]
          %v517 = vld [vmem:[%s390 + $0x10] sm:$0xf]
          %v518 = vld [vmem:[%s390 + $0x14] sm:$0xf]
          %v519 = vld [vmem:[%s390 + $0x18] sm:$0xf]
          %v520 = vld [vmem:[%s390 + $0x1c] sm:$0xf]
          %v521 = vld [vmem:[%s390 + $0x20] sm:$0xf]
          %v522 = vld [vmem:[%s390 + $0x24] sm:$0xf]
          %v523 = vld [vmem:[%s390 + $0x28] sm:$0xf]
          %v524 = vld [vmem:[%s390 + $0x2c] sm:$0xf]
          %v525 = vld [vmem:[%s390 + $0x30] sm:$0xf]
          %v526 = vld [vmem:[%s390 + $0x34] sm:$0xf]
          %v527 = vld [vmem:[%s390 + $0x38] sm:$0xf]
          %v528 = vld [vmem:[%s390 + $0x3c] sm:$0xf]
          %v529 = vld [vmem:[%s450] sm:$0x1]
          %v531 = vlaneseq
          %v532 = vshrl.u32 %v531, 7
          %v533 = vsub.s32 0, %v532
          %v534 = vrot.slane %v529, %v533
          %v552 = vunpack.c.l.b16 %v513
          %v553 = vunpack.c.l.b16 %v514
          %v554 = vunpack.c.l.b16 %v515
          %v555 = vunpack.c.l.b16 %v516
          %v556 = vunpack.c.l.b16 %v517
          %v557 = vunpack.c.l.b16 %v518
          %v558 = vunpack.c.l.b16 %v519
          %v559 = vunpack.c.l.b16 %v520
          %v560 = vunpack.c.l.b16 %v521
          %v561 = vunpack.c.l.b16 %v522
          %v562 = vunpack.c.l.b16 %v523
          %v563 = vunpack.c.l.b16 %v524
          %v564 = vunpack.c.l.b16 %v525
          %v565 = vunpack.c.l.b16 %v526
          %v566 = vunpack.c.l.b16 %v527
          %v567 = vunpack.c.l.b16 %v528
          %v568 = vpack.c.b16 %v553, %v552
          %v569 = vpack.c.b16 %v555, %v554
          %v570 = vpack.c.b16 %v557, %v556
          %v571 = vpack.c.b16 %v559, %v558
          %v572 = vpack.c.b16 %v561, %v560
          %v573 = vpack.c.b16 %v563, %v562
          %v574 = vpack.c.b16 %v565, %v564
          %v575 = vpack.c.b16 %v567, %v566
          %584 = vmatprep.subr.bf16.mxu0 0
          %585 = vmatpush1.bf16.msra.mxu0 %v568
          %586 = vmatprep.subr.bf16.mxu0 0
          %587 = vmatpush1.bf16.msra.mxu0 %v569
          %588 = vmatprep.subr.bf16.mxu0 0
          %589 = vmatpush1.bf16.msra.mxu0 %v570
          %590 = vmatprep.subr.bf16.mxu0 0
          %591 = vmatpush1.bf16.msra.mxu0 %v571
          %592 = vmatprep.subr.bf16.mxu0 0
          %593 = vmatpush1.bf16.msra.mxu0 %v572
          %594 = vmatprep.subr.bf16.mxu0 0
          %595 = vmatpush1.bf16.msra.mxu0 %v573
          %596 = vmatprep.subr.bf16.mxu0 0
          %597 = vmatpush1.bf16.msra.mxu0 %v574
          %598 = vmatprep.subr.bf16.mxu0 0
          %599 = vmatpush1.bf16.msra.mxu0 %v575
          %600 = vmatprep.subr.bf16.mxu0 0
          %601 = vmatpush1.bf16.msra.mxu0 0
          %602 = vmatprep.subr.bf16.mxu0 0
          %603 = vmatpush1.bf16.msra.mxu0 0
          %604 = vmatprep.subr.bf16.mxu0 0
          %605 = vmatpush1.bf16.msra.mxu0 0
          %606 = vmatprep.subr.bf16.mxu0 0
          %607 = vmatpush1.bf16.msra.mxu0 0
          %608 = vmatprep.subr.bf16.mxu0 0
          %609 = vmatpush1.bf16.msra.mxu0 0
          %610 = vmatprep.subr.bf16.mxu0 0
          %611 = vmatpush1.bf16.msra.mxu0 0
          %612 = vmatprep.subr.bf16.mxu0 0
          %613 = vmatpush1.bf16.msra.mxu0 0
          %614 = vmatprep.subr.bf16.mxu0 0
          %615 = vmatpush1.bf16.msra.mxu0 0
          %616 = vmatprep.mubr.bf16.mxu0 0
          %617 = vmatmul.mubr.bf16.gmra.mrb[0].mxu0 %v511
          %v618 = vpop.f32.mrb[0].mxu0
          %v619 = vadd.f32 %v534, %v618
          %v620 = vpop.f32.mrb[0].mxu0
          %v621 = vpop.f32.mrb[0].mxu0
          %v622 = vadd.f32 %v534, %v621
          %v623 = vpop.f32.mrb[0].mxu0
          %624 = vmatprep.mubr.bf16.mxu0 0
          %625 = vmatmul.mubr.bf16.gmra.mrb[0].mxu0 %v512
          %v626 = vpop.f32.mrb[0].mxu0
          %v627 = vadd.f32 %v534, %v626
          %v628 = vpop.f32.mrb[0].mxu0
          %v629 = vpop.f32.mrb[0].mxu0
          %v630 = vpop.f32.mrb[0].mxu0
          %631 = vdwg.mxu0
          %v632 = vmax.f32 %v619, 0.0
          %v633 = vmax.f32 %v622, 0.0
          %v634 = vmax.f32 %v627, 0.0
          %v635 = vpack.c.bf16 %v633, %v632
          %v636 = vpack.c.bf16 %v634, %v634
          %v637 = vld [vmem:[%s399] sm:$0xf]
          %v638 = vld [vmem:[%s399 + $0x4] sm:$0xf]
          %v639 = vld [vmem:[%s399 + $0x8] sm:$0xf]
          %v640 = vld [vmem:[%s399 + $0xc] sm:$0xf]
          %v641 = vld [vmem:[%s399 + $0x10] sm:$0xf]
          %v642 = vld [vmem:[%s399 + $0x14] sm:$0xf]
          %v643 = vld [vmem:[%s399 + $0x18] sm:$0xf]
          %v644 = vld [vmem:[%s399 + $0x1c] sm:$0xf]
          %v645 = vld [vmem:[%s399 + $0x20] sm:$0xf]
          %v646 = vld [vmem:[%s399 + $0x24] sm:$0xf]
          %v647 = vld [vmem:[%s399 + $0x28] sm:$0xf]
          %v648 = vld [vmem:[%s399 + $0x2c] sm:$0xf]
          %v649 = vld [vmem:[%s399 + $0x30] sm:$0xf]
          %v650 = vld [vmem:[%s399 + $0x34] sm:$0xf]
          %v651 = vld [vmem:[%s399 + $0x38] sm:$0xf]
          %v652 = vld [vmem:[%s399 + $0x3c] sm:$0xf]
          %v653 = vld [vmem:[%s453] sm:$0x1]
          %v655 = vlaneseq
          %v656 = vshrl.u32 %v655, 7
          %v657 = vsub.s32 0, %v656
          %v658 = vrot.slane %v653, %v657
          %v676 = vunpack.c.l.b16 %v637
          %v677 = vunpack.c.l.b16 %v638
          %v678 = vunpack.c.l.b16 %v639
          %v679 = vunpack.c.l.b16 %v640
          %v680 = vunpack.c.l.b16 %v641
          %v681 = vunpack.c.l.b16 %v642
          %v682 = vunpack.c.l.b16 %v643
          %v683 = vunpack.c.l.b16 %v644
          %v684 = vunpack.c.l.b16 %v645
          %v685 = vunpack.c.l.b16 %v646
          %v686 = vunpack.c.l.b16 %v647
          %v687 = vunpack.c.l.b16 %v648
          %v688 = vunpack.c.l.b16 %v649
          %v689 = vunpack.c.l.b16 %v650
          %v690 = vunpack.c.l.b16 %v651
          %v691 = vunpack.c.l.b16 %v652
          %v692 = vpack.c.b16 %v677, %v676
          %v693 = vpack.c.b16 %v679, %v678
          %v694 = vpack.c.b16 %v681, %v680
          %v695 = vpack.c.b16 %v683, %v682
          %v696 = vpack.c.b16 %v685, %v684
          %v697 = vpack.c.b16 %v687, %v686
          %v698 = vpack.c.b16 %v689, %v688
          %v699 = vpack.c.b16 %v691, %v690
          %708 = vmatprep.subr.bf16.mxu0 0
          %709 = vmatpush1.bf16.msra.mxu0 %v692
          %710 = vmatprep.subr.bf16.mxu0 0
          %711 = vmatpush1.bf16.msra.mxu0 %v693
          %712 = vmatprep.subr.bf16.mxu0 0
          %713 = vmatpush1.bf16.msra.mxu0 %v694
          %714 = vmatprep.subr.bf16.mxu0 0
          %715 = vmatpush1.bf16.msra.mxu0 %v695
          %716 = vmatprep.subr.bf16.mxu0 0
          %717 = vmatpush1.bf16.msra.mxu0 %v696
          %718 = vmatprep.subr.bf16.mxu0 0
          %719 = vmatpush1.bf16.msra.mxu0 %v697
          %720 = vmatprep.subr.bf16.mxu0 0
          %721 = vmatpush1.bf16.msra.mxu0 %v698
          %722 = vmatprep.subr.bf16.mxu0 0
          %723 = vmatpush1.bf16.msra.mxu0 %v699
          %724 = vmatprep.subr.bf16.mxu0 0
          %725 = vmatpush1.bf16.msra.mxu0 0
          %726 = vmatprep.subr.bf16.mxu0 0
          %727 = vmatpush1.bf16.msra.mxu0 0
          %728 = vmatprep.subr.bf16.mxu0 0
          %729 = vmatpush1.bf16.msra.mxu0 0
          %730 = vmatprep.subr.bf16.mxu0 0
          %731 = vmatpush1.bf16.msra.mxu0 0
          %732 = vmatprep.subr.bf16.mxu0 0
          %733 = vmatpush1.bf16.msra.mxu0 0
          %734 = vmatprep.subr.bf16.mxu0 0
          %735 = vmatpush1.bf16.msra.mxu0 0
          %736 = vmatprep.subr.bf16.mxu0 0
          %737 = vmatpush1.bf16.msra.mxu0 0
          %738 = vmatprep.subr.bf16.mxu0 0
          %739 = vmatpush1.bf16.msra.mxu0 0
          %740 = vmatprep.mubr.bf16.mxu0 0
          %741 = vmatmul.mubr.bf16.gmra.mrb[0].mxu0 %v635
          %v742 = vpop.f32.mrb[0].mxu0
          %v743 = vadd.f32 %v658, %v742
          %v744 = vpop.f32.mrb[0].mxu0
          %v745 = vpop.f32.mrb[0].mxu0
          %v746 = vadd.f32 %v658, %v745
          %v747 = vpop.f32.mrb[0].mxu0
          %748 = vmatprep.mubr.bf16.mxu0 0
          %749 = vmatmul.mubr.bf16.gmra.mrb[0].mxu0 %v636
          %v750 = vpop.f32.mrb[0].mxu0
          %v751 = vadd.f32 %v658, %v750
          %v752 = vpop.f32.mrb[0].mxu0
          %v753 = vpop.f32.mrb[0].mxu0
          %v754 = vpop.f32.mrb[0].mxu0
          %755 = vdwg.mxu0
          %p756 = scmp.eq.s32.totalorder %s43, 1
          // Predicated region
          $region88: #{tpu_custom_call.1} parent=86 // pred_check
            %p757 = pneg %p756
          $region89: #{tpu_custom_call.1} parent=86 // pred_check_branch
            %759 = sbr.rel (%p757) target = $region91
          $region90: #{tpu_custom_call.1} parent=86 // pred_region
            %760 = vst [vmem:[%s446] sm:$0xff] %v743
            %761 = vst [vmem:[%s446 + $0x8] sm:$0xff] %v746
            %762 = vst [vmem:[%s446 + $0x10] sm:$0xff] %v751
          $region91: #{tpu_custom_call.1} parent=86 // pred_fallthru
            _
          %p763 = scmp.lt.s32.totalorder %s43, 1
          // Predicated region
          $region92: #{tpu_custom_call.1} parent=86 // pred_check
            %p764 = pneg %p763
          $region93: #{tpu_custom_call.1} parent=86 // pred_check_branch
            %766 = sbr.rel (%p764) target = $region95
          $region94: #{tpu_custom_call.1} parent=86 // pred_region
            %v767 = vmax.f32 %v743, 0.0
            %v768 = vmax.f32 %v746, 0.0
            %v769 = vmax.f32 %v751, 0.0
            %770 = vst [vmem:[%s446] sm:$0xff] %v767
            %771 = vst [vmem:[%s446 + $0x8] sm:$0xff] %v768
            %772 = vst [vmem:[%s446 + $0x10] sm:$0xff] %v769
            %773 = vst [vmem:[#allocation2] sm:$0xff] %v767
            %774 = vst [vmem:[#allocation2 + $0x8] sm:$0xff] %v768
            %775 = vst [vmem:[#allocation2 + $0x10] sm:$0xff] %v769
          $region95: #{tpu_custom_call.1} parent=86 // pred_fallthru
            _
        $region87: #{tpu_custom_call.1} parent=47 // pred_fallthru
          _
        %s776 = sand.u32 %s231, 1
        %s777 = scalar_lea.sflag [#allocation9], %s776
        %s778 = sand.u32 %s231, 1
        %s779 = smul.addr %s778, 24
        %s780 = scalar_lea.vmem [#allocation17], %s779
        // Predicated region
        $region96: #{tpu_custom_call.1} parent=47 // pred_check
          %p781 = pneg %p241
        $region97: #{tpu_custom_call.1} parent=47 // pred_check_branch
          %783 = sbr.rel (%p781) target = $region99
        $region98: #{tpu_custom_call.1} parent=47 // pred_region
          %s785 = ssub.s32 384, 384
          %786 = vsyncadd %s777, %s785
          %s787 = smul.addr %s43, 3
          %s788 = smul.addr %s787, 128
          %s789 = scalar_lea.hbm %s9, %s788
          %s790 = sshll.u32 %s780, 4
          %s791 = int_to_ptr.vmem [resolvable:$true] %s790
          %796 = dma.vmem_to_hbm [thread:$0]  %s791, 384, %s789, %s777, 128, 128, 8
        $region99: #{tpu_custom_call.1} parent=47 // pred_fallthru
          _
      $region48: #{tpu_custom_call.1} parent=5 // pred_fallthru
        _
      %p797 = scmp.le.s32.totalorder 2, %s34
      // Predicated region
      $region100: #{tpu_custom_call.1} parent=5 // pred_check
        %p798 = pneg %p797
      $region101: #{tpu_custom_call.1} parent=5 // pred_check_branch
        %800 = sbr.rel (%p798) target = $region103
      $region102: #{tpu_custom_call.1} parent=5 // pred_region
        %s801 = ssub.s32 %s34, 2
        // Predicated region
        $region104: #{tpu_custom_call.1} parent=102 // pred_check
          %p802 = pneg %p247
        $region105: #{tpu_custom_call.1} parent=102 // pred_check_branch
          %804 = sbr.rel (%p802) target = $region107
        $region106: #{tpu_custom_call.1} parent=102 // pred_region
          %s805 = sand.u32 %s232, 1
          %s806 = scalar_lea.sflag [#allocation9], %s805
          %s807 = sand.u32 %s232, 1
          %s808 = smul.addr %s807, 24
          %s809 = scalar_lea.vmem [#allocation17], %s808
          %810 = dma.done %s806, 384
        $region107: #{tpu_custom_call.1} parent=102 // pred_fallthru
          _
      $region103: #{tpu_custom_call.1} parent=5 // pred_fallthru
        _
    $region6: #{tpu_custom_call.1} parent=1 // loop_footer
      %s38 = sadd.s32 1, %s34
    $region7: #{tpu_custom_call.1} parent=1 // loop_footer_branch
      %33 = sbr.rel target = $region3
    $region8: #{tpu_custom_call.1} parent=1 // loop_exit
      _
    %811 = vsyncpa [#allocation8], 1
    %s812 = scalar_lea.sflag [#allocation8], 1
    %813 = vsyncpa %s812, 1
    %814 = vsyncpa [#allocation13], 1
    %s815 = scalar_lea.sflag [#allocation13], 1
    %816 = vsyncpa %s815, 1
    %817 = vsyncpa [#allocation16], 1
    %s818 = scalar_lea.sflag [#allocation16], 1
    %819 = vsyncpa %s818, 1
    %820 = vsyncpa [#allocation9], 1
    %s821 = scalar_lea.sflag [#allocation9], 1
    %822 = vsyncpa %s821, 1
    %823 = vsyncpa [#allocation10], 1
    %s824 = scalar_lea.sflag [#allocation10], 1
    %825 = vsyncpa %s824, 1

</llo_original>
